<compile_context>
chip_gen: v7x
topology: tpu7x:2x2x1
jax: 0.10.0
libtpu: 0.0.40
codegen_flags: <defaults>
</compile_context>

<pallas_src>
import functools

import jax
import jax.numpy as jnp
from jax.experimental import pallas as pl
from jax.experimental.pallas import tpu as pltpu


def _l1_loss_kernel(pred_ref, gt_ref, m_ref, out_ref, *,
                    dp, ppr, n_valid, tile_rows, need_mask):
    i = pl.program_id(0)

    x = pred_ref[...]                        # (tile_rows, 128) f32, ppr points/row
    g = gt_ref[...]

    # Per-point sum of squares, broadcast to each point's dp lanes, via a
    # block-diagonal ones matrix on the MXU (f32 matmul, f32 accumulation).
    sumsq = jnp.dot(x * x, m_ref[...], preferred_element_type=jnp.float32)
    inv = jax.lax.rsqrt(sumsq)               # exact rsqrt on the EUP
    diff = jnp.abs(x * inv - g)              # (tile_rows, 128), pure VPU

    if need_mask:
        # Zero lanes belonging to padded / out-of-bounds points (their
        # rsqrt(0) = inf would otherwise turn into NaN contributions).
        row = jax.lax.broadcasted_iota(jnp.int32, (tile_rows, 128), 0)
        lane = jax.lax.broadcasted_iota(jnp.int32, (tile_rows, 128), 1)
        point = (i * tile_rows + row) * ppr + lane // dp
        diff = jnp.where(point < n_valid, diff, jnp.float32(0.0))

    # Reduce the tile to a lane-dense (8, 128) partial with vreg adds only,
    # interleaving a few accumulators to break the dependency chain.
    n_chunks = tile_rows // 8
    n_acc = min(4, n_chunks)
    accs = [diff[j * 8:(j + 1) * 8, :] for j in range(n_acc)]
    for j in range(n_acc, n_chunks):
        accs[j % n_acc] = accs[j % n_acc] + diff[j * 8:(j + 1) * 8, :]
    partial = accs[0]
    for a in accs[1:]:
        partial = partial + a
    out_ref[0] = partial


def l1_loss(pred: jax.Array, gt: jax.Array, *, target_tile_rows: int = 1024) -> jax.Array:
    """Pallas TPU implementation of the normalized L1 loss. Returns a scalar."""
    assert pred.shape == gt.shape and pred.ndim == 2
    assert target_tile_rows % 8 == 0
    n, d = pred.shape
    if d > 128:
        # TODO(synk): feature dims > 128 would need a multi-row-per-point layout.
        raise NotImplementedError("l1_loss kernel supports feature dims <= 128")

    # dp: features padded to a power of two so each point owns dp of the 128 lanes.
    dp = max(1, 1 << (d - 1).bit_length())
    ppr = 128 // dp                          # points per 128-lane row

    p = pred.astype(jnp.float32)
    g = gt.astype(jnp.float32)
    if dp != d:                              # zero-pad features: norm & |diff| unaffected
        p = jnp.pad(p, ((0, 0), (0, dp - d)))
        g = jnp.pad(g, ((0, 0), (0, dp - d)))

    # Pad the point count so the packed row count is sublane (8) aligned.
    n_unit = 8 * ppr
    n_pad = ((n + n_unit - 1) // n_unit) * n_unit
    if n_pad != n:
        p = jnp.pad(p, ((0, n_pad - n), (0, 0)))
        g = jnp.pad(g, ((0, n_pad - n), (0, 0)))

    rows = (n_pad * dp) // 128               # multiple of 8
    p2 = p.reshape(rows, 128)                # row-major reshape: no data movement
    g2 = g.reshape(rows, 128)

    # Tile: multiple of 8 rows, clamped so small inputs run as a single block.
    tile_rows = min(target_tile_rows, rows)
    num_blocks = (rows + tile_rows - 1) // tile_rows   # ragged last block is masked
    need_mask = (num_blocks * tile_rows * ppr != n)

    # 128x128 block-diagonal ones matrix: (x*x) @ M == per-point sumsq, broadcast.
    group = jnp.arange(128, dtype=jnp.int32) // dp
    m = (group[:, None] == group[None, :]).astype(jnp.float32)

    kernel = functools.partial(
        _l1_loss_kernel, dp=dp, ppr=ppr, n_valid=n,
        tile_rows=tile_rows, need_mask=need_mask)

    partials = pl.pallas_call(
        kernel,
        out_shape=jax.ShapeDtypeStruct((num_blocks, 8, 128), jnp.float32),
        grid_spec=pltpu.PrefetchScalarGridSpec(
            num_scalar_prefetch=0,
            grid=(num_blocks,),
            in_specs=[
                pl.BlockSpec((tile_rows, 128), lambda i: (i, 0)),
                pl.BlockSpec((tile_rows, 128), lambda i: (i, 0)),
                pl.BlockSpec((128, 128), lambda i: (0, 0)),    # resident constant
            ],
            out_specs=pl.BlockSpec((1, 8, 128), lambda i: (i, 0, 0)),
        ),
        compiler_params=pltpu.CompilerParams(
            dimension_semantics=("parallel",),   # independent blocks -> megacore OK
        ),
    )(p2, g2, m)

    # Tiny final reduction + mean (over the ORIGINAL n*d elements) in JAX.
    return jnp.sum(partials) / jnp.float32(n * d)


def _l1_loss_ref(pred, gt):
    p = pred.astype(jnp.float32)
    g = gt.astype(jnp.float32)
    norm = jnp.sqrt(jnp.sum(p * p, axis=1, keepdims=True))
    return jnp.mean(jnp.abs(p / norm - g))


if __name__ == "__main__":
    key = jax.random.PRNGKey(0)
    keys = jax.random.split(key, 4)

    cases = [
        (256, 8, {}),                             # aligned: zero-copy packed path
        (300, 8, {}),                             # point padding + in-kernel mask
        (257, 3, {}),                             # feature padding (3 -> 4 lanes) + mask
        (8448, 8, dict(target_tile_rows=256)),    # multi-block grid + ragged last block
    ]
    for idx, (n, d, kw) in enumerate(cases):
        kp, kg = jax.random.split(keys[idx], 2)
        pred = jax.random.normal(kp, (n, d), dtype=jnp.float32)
        gt = jax.random.normal(kg, (n, d), dtype=jnp.float32)
        out = jax.block_until_ready(l1_loss(pred, gt, **kw))
        ref = _l1_loss_ref(pred, gt)
        assert jnp.allclose(out, ref, rtol=1e-4, atol=1e-6), (n, d, out, ref)

    print("KERNEL_OK")
</pallas_src>

<mosaic_0001>
module attributes {stable_mosaic.version = 11 : i64} {
  func.func @_l1_loss_kernel(%arg0: i32, %arg1: memref<16x128xf32, #tpu.memory_space<vmem>>, %arg2: memref<16x128xf32, #tpu.memory_space<vmem>>, %arg3: memref<128x128xf32, #tpu.memory_space<vmem>>, %arg4: memref<1x8x128xf32, #tpu.memory_space<vmem>>) attributes {dimension_semantics = [#tpu.dimension_semantics<parallel>], iteration_bounds = array<i64: 1>, scalar_prefetch = 0 : i64, scratch_operands = 0 : i64, tpu.core_type = #tpu.core_type<tc>, window_params = [{transform_indices = @transform_0, window_bounds = array<i64: 16, 128>}, {transform_indices = @transform_1, window_bounds = array<i64: 16, 128>}, {pipeline_mode = #tpu.pipeline_mode<synchronous>, transform_indices = @transform_2, window_bounds = array<i64: 128, 128>}, {transform_indices = @transform_3, window_bounds = array<i64: 1, 8, 128>}]} {
    %c0 = arith.constant 0 : index
    %c0_0 = arith.constant 0 : index
    %0 = vector.load %arg1[%c0, %c0_0] : memref<16x128xf32, #tpu.memory_space<vmem>>, vector<16x128xf32>
    %c0_1 = arith.constant 0 : index
    %c0_2 = arith.constant 0 : index
    %1 = vector.load %arg2[%c0_1, %c0_2] : memref<16x128xf32, #tpu.memory_space<vmem>>, vector<16x128xf32>
    %2 = arith.mulf %0, %0 : vector<16x128xf32>
    %c0_3 = arith.constant 0 : index
    %c0_4 = arith.constant 0 : index
    %3 = vector.load %arg3[%c0_3, %c0_4] : memref<128x128xf32, #tpu.memory_space<vmem>>, vector<128x128xf32>
    %cst = arith.constant dense<0.000000e+00> : vector<16x128xf32>
    %4 = tpu.matmul %2, %3, %cst {dimension_numbers = #tpu.dot_dimension_numbers<[1], [0], [0], [1], [0, 0, 1, 1], [], []>} : vector<16x128xf32>, vector<128x128xf32>, vector<16x128xf32> -> vector<16x128xf32>
    %5 = math.rsqrt %4 : vector<16x128xf32>
    %6 = arith.mulf %0, %5 : vector<16x128xf32>
    %7 = arith.subf %6, %1 : vector<16x128xf32>
    %8 = math.absf %7 : vector<16x128xf32>
    %9 = vector.extract_strided_slice %8 {offsets = [0, 0], sizes = [8, 128], strides = [1, 1]} : vector<16x128xf32> to vector<8x128xf32>
    %10 = vector.extract_strided_slice %8 {offsets = [8, 0], sizes = [8, 128], strides = [1, 1]} : vector<16x128xf32> to vector<8x128xf32>
    %11 = arith.addf %9, %10 : vector<8x128xf32>
    %c0_5 = arith.constant 0 : index
    %c0_6 = arith.constant 0 : index
    %c0_7 = arith.constant 0 : index
    %12 = vector.load %arg4[%c0_5, %c0_6, %c0_7] : memref<1x8x128xf32, #tpu.memory_space<vmem>>, vector<1x8x128xf32>
    %13 = vector.shape_cast %12 : vector<1x8x128xf32> to vector<8x128xf32>
    %14 = vector.shape_cast %11 : vector<8x128xf32> to vector<1x8x128xf32>
    tpu.vector_store %arg4[%c0_5, %c0_6, %c0_7], %14 {strides = array<i32>} : memref<1x8x128xf32, #tpu.memory_space<vmem>>, vector<1x8x128xf32>,
    return
  }
  func.func @transform_0(%arg0: i32) -> (i32, i32) {
    %c0_i32 = arith.constant 0 : i32
    %c0_i32_0 = arith.constant 0 : i32
    return %arg0, %c0_i32 : i32, i32
  }
  func.func @transform_1(%arg0: i32) -> (i32, i32) {
    %c0_i32 = arith.constant 0 : i32
    %c0_i32_0 = arith.constant 0 : i32
    return %arg0, %c0_i32 : i32, i32
  }
  func.func @transform_2(%arg0: i32) -> (i32, i32) {
    %c0_i32 = arith.constant 0 : i32
    %c0_i32_0 = arith.constant 0 : i32
    %c0_i32_1 = arith.constant 0 : i32
    return %c0_i32, %c0_i32_0 : i32, i32
  }
  func.func @transform_3(%arg0: i32) -> (i32, i32, i32) {
    %c0_i32 = arith.constant 0 : i32
    %c0_i32_0 = arith.constant 0 : i32
    %c0_i32_1 = arith.constant 0 : i32
    return %arg0, %c0_i32, %c0_i32_0 : i32, i32, i32
  }
}

</mosaic_0001>

<llo_original>
// kernel: tpu_custom_call.1
$region0: #{tpu_custom_call.1}
  #allocation0 [shape = 'u32[]', space=smem, size = 0x4, offset = 0x4, fixed_abs, tag = 'smem constant byte address 0x4 - core index']
  #allocation1 [shape = 'u32[144,128]{1,0:T(1,128)}', space=vmem, size = 0x12000, scoped, tag = 'internal scratch']
  %s0 = inlined_call_operand.hbm [shape: f32[16,128], index: 0, kind: input, shape index: {}]
  %s1 = inlined_call_operand.hbm [shape: f32[16,128], index: 1, kind: input, shape index: {}]
  %s2 = inlined_call_operand.hbm [shape: f32[128,128], index: 2, kind: input, shape index: {}]
  %s3 = inlined_call_operand.hbm [shape: f32[1,8,128], index: 3, kind: output, shape index: {}]
  %s4 = sld [smem:[#allocation0]]
  $region34: #{tpu_custom_call.1} parent=0
    _
  %s6 = ssub.s32 1, %s4
  %s7 = scalar_select 0, %s6, %s4
  $region1: #{tpu_custom_call.1} parent=0
    #allocation2 [shape = 'u8[8192]{0}', space=vmem, size = 0x2000, scoped, tag = 'input window, operand 0, single buffered']
    #allocation3 [shape = 's32[1]{0}', space=sflag, size = 0x4, scoped, tag = 'scoped memory for tpu_custom_call.1']
    #allocation4 [shape = 's32[1]{0}', space=sflag, size = 0x4, scoped, tag = 'scoped memory for tpu_custom_call.1']
    #allocation5 [shape = 'u8[8192]{0}', space=vmem, size = 0x2000, scoped, tag = 'input window, operand 1, single buffered']
    #allocation6 [shape = 's32[1]{0}', space=sflag, size = 0x4, scoped, tag = 'scoped memory for tpu_custom_call.1']
    #allocation7 [shape = 'u8[65536]{0}', space=vmem, size = 0x10000, scoped, tag = 'input window, operand 2, single buffered']
    #allocation8 [shape = 'u8[4096]{0}', space=vmem, size = 0x1000, scoped, tag = 'output window, operand 0, single buffered']
    %8 = vsyncpa [#allocation3], 0
    %9 = vsyncpa [#allocation6], 0
    %10 = vsyncpa [#allocation4], 0
    // Predicated region
    $region2: #{tpu_custom_call.1} parent=1 // pred_check
      _
    $region3: #{tpu_custom_call.1} parent=1 // pred_check_branch
      %12 = sbr.rel (0) target = $region5
    $region4: #{tpu_custom_call.1} parent=1 // pred_region
      %s14 = ssub.s32 256, 256
      %15 = vsyncadd [#allocation3], %s14
      %s16 = sshll.u32 [#allocation2], 4
      %s17 = int_to_ptr.vmem [resolvable:$true] %s16
      %22 = dma.hbm_to_vmem [thread:$0]  %s0, 256, %s17, [#allocation3], 128, 128, 8
    $region5: #{tpu_custom_call.1} parent=1 // pred_fallthru
      _
    // Predicated region
    $region6: #{tpu_custom_call.1} parent=1 // pred_check
      _
    $region7: #{tpu_custom_call.1} parent=1 // pred_check_branch
      %24 = sbr.rel (0) target = $region9
    $region8: #{tpu_custom_call.1} parent=1 // pred_region
      %s26 = ssub.s32 256, 256
      %27 = vsyncadd [#allocation6], %s26
      %s28 = sshll.u32 [#allocation5], 4
      %s29 = int_to_ptr.vmem [resolvable:$true] %s28
      %34 = dma.hbm_to_vmem [thread:$0]  %s1, 256, %s29, [#allocation6], 128, 128, 8
    $region9: #{tpu_custom_call.1} parent=1 // pred_fallthru
      _
    // Predicated region
    $region10: #{tpu_custom_call.1} parent=1 // pred_check
      _
    $region11: #{tpu_custom_call.1} parent=1 // pred_check_branch
      %36 = sbr.rel (0) target = $region13
    $region12: #{tpu_custom_call.1} parent=1 // pred_region
      %s38 = ssub.s32 2048, 2048
      %39 = vsyncadd [#allocation6], %s38
      %s40 = sshll.u32 [#allocation7], 4
      %s41 = int_to_ptr.vmem [resolvable:$true] %s40
      %46 = dma.hbm_to_vmem [thread:$0]  %s2, 2048, %s41, [#allocation6], 128, 128, 8
    $region13: #{tpu_custom_call.1} parent=1 // pred_fallthru
      _
    // Predicated region
    $region14: #{tpu_custom_call.1} parent=1 // pred_check
      _
    $region15: #{tpu_custom_call.1} parent=1 // pred_check_branch
      %48 = sbr.rel (0) target = $region17
    $region16: #{tpu_custom_call.1} parent=1 // pred_region
      %49 = dma.done [#allocation3], 256
    $region17: #{tpu_custom_call.1} parent=1 // pred_fallthru
      _
    // Predicated region
    $region18: #{tpu_custom_call.1} parent=1 // pred_check
      _
    $region19: #{tpu_custom_call.1} parent=1 // pred_check_branch
      %51 = sbr.rel (0) target = $region21
    $region20: #{tpu_custom_call.1} parent=1 // pred_region
      %52 = dma.done [#allocation6], 256
    $region21: #{tpu_custom_call.1} parent=1 // pred_fallthru
      _
    // Predicated region
    $region22: #{tpu_custom_call.1} parent=1 // pred_check
      _
    $region23: #{tpu_custom_call.1} parent=1 // pred_check_branch
      %54 = sbr.rel (0) target = $region25
    $region24: #{tpu_custom_call.1} parent=1 // pred_region
      %55 = dma.done [#allocation6], 2048
    $region25: #{tpu_custom_call.1} parent=1 // pred_fallthru
      _
    %v56 = vld [vmem:[#allocation2] sm:$0xff]
    %v57 = vld [vmem:[#allocation2 + $0x8] sm:$0xff]
    %v58 = vld [vmem:[#allocation5] sm:$0xff]
    %v59 = vld [vmem:[#allocation5 + $0x8] sm:$0xff]
    %v60 = vmul.f32 %v56, %v56
    %v61 = vmul.f32 %v57, %v57
    %v62 = vld [vmem:[#allocation7] sm:$0xff]
    %v63 = vld [vmem:[#allocation7 + $0x8] sm:$0xff]
    %v64 = vld [vmem:[#allocation7 + $0x10] sm:$0xff]
    %v65 = vld [vmem:[#allocation7 + $0x18] sm:$0xff]
    %v66 = vld [vmem:[#allocation7 + $0x20] sm:$0xff]
    %v67 = vld [vmem:[#allocation7 + $0x28] sm:$0xff]
    %v68 = vld [vmem:[#allocation7 + $0x30] sm:$0xff]
    %v69 = vld [vmem:[#allocation7 + $0x38] sm:$0xff]
    %v70 = vld [vmem:[#allocation7 + $0x40] sm:$0xff]
    %v71 = vld [vmem:[#allocation7 + $0x48] sm:$0xff]
    %v72 = vld [vmem:[#allocation7 + $0x50] sm:$0xff]
    %v73 = vld [vmem:[#allocation7 + $0x58] sm:$0xff]
    %v74 = vld [vmem:[#allocation7 + $0x60] sm:$0xff]
    %v75 = vld [vmem:[#allocation7 + $0x68] sm:$0xff]
    %v76 = vld [vmem:[#allocation7 + $0x70] sm:$0xff]
    %v77 = vld [vmem:[#allocation7 + $0x78] sm:$0xff]
    %78 = vmatprep.subr.mxu0 0.0
    %79 = vmatpush1.msra.mxu0 %v62
    %80 = vmatprep.subr.mxu0 0.0
    %81 = vmatpush1.msra.mxu0 %v63
    %82 = vmatprep.subr.mxu0 0.0
    %83 = vmatpush1.msra.mxu0 %v64
    %84 = vmatprep.subr.mxu0 0.0
    %85 = vmatpush1.msra.mxu0 %v65
    %86 = vmatprep.subr.mxu0 0.0
    %87 = vmatpush1.msra.mxu0 %v66
    %88 = vmatprep.subr.mxu0 0.0
    %89 = vmatpush1.msra.mxu0 %v67
    %90 = vmatprep.subr.mxu0 0.0
    %91 = vmatpush1.msra.mxu0 %v68
    %92 = vmatprep.subr.mxu0 0.0
    %93 = vmatpush1.msra.mxu0 %v69
    %94 = vmatprep.subr.mxu0 0.0
    %95 = vmatpush1.msra.mxu0 %v70
    %96 = vmatprep.subr.mxu0 0.0
    %97 = vmatpush1.msra.mxu0 %v71
    %98 = vmatprep.subr.mxu0 0.0
    %99 = vmatpush1.msra.mxu0 %v72
    %100 = vmatprep.subr.mxu0 0.0
    %101 = vmatpush1.msra.mxu0 %v73
    %102 = vmatprep.subr.mxu0 0.0
    %103 = vmatpush1.msra.mxu0 %v74
    %104 = vmatprep.subr.mxu0 0.0
    %105 = vmatpush1.msra.mxu0 %v75
    %106 = vmatprep.subr.mxu0 0.0
    %107 = vmatpush1.msra.mxu0 %v76
    %108 = vmatprep.subr.mxu0 0.0
    %109 = vmatpush1.msra.mxu0 %v77
    %110 = vmatprep.subr.mxu0 0.0
    %111 = vmatpush1.msra.mxu0 0.0
    %112 = vmatprep.subr.mxu0 0.0
    %113 = vmatpush1.msra.mxu0 0.0
    %114 = vmatprep.subr.mxu0 0.0
    %115 = vmatpush1.msra.mxu0 0.0
    %116 = vmatprep.subr.mxu0 0.0
    %117 = vmatpush1.msra.mxu0 0.0
    %118 = vmatprep.subr.mxu0 0.0
    %119 = vmatpush1.msra.mxu0 0.0
    %120 = vmatprep.subr.mxu0 0.0
    %121 = vmatpush1.msra.mxu0 0.0
    %122 = vmatprep.subr.mxu0 0.0
    %123 = vmatpush1.msra.mxu0 0.0
    %124 = vmatprep.subr.mxu0 0.0
    %125 = vmatpush1.msra.mxu0 0.0
    %126 = vmatprep.subr.mxu0 0.0
    %127 = vmatpush1.msra.mxu0 0.0
    %128 = vmatprep.subr.mxu0 0.0
    %129 = vmatpush1.msra.mxu0 0.0
    %130 = vmatprep.subr.mxu0 0.0
    %131 = vmatpush1.msra.mxu0 0.0
    %132 = vmatprep.subr.mxu0 0.0
    %133 = vmatpush1.msra.mxu0 0.0
    %134 = vmatprep.subr.mxu0 0.0
    %135 = vmatpush1.msra.mxu0 0.0
    %136 = vmatprep.subr.mxu0 0.0
    %137 = vmatpush1.msra.mxu0 0.0
    %138 = vmatprep.subr.mxu0 0.0
    %139 = vmatpush1.msra.mxu0 0.0
    %140 = vmatprep.subr.mxu0 0.0
    %141 = vmatpush1.msra.mxu0 0.0
    %142 = vmatprep.mubr.f32.mxu0 0.0
    %143 = vmatmul.mubr.f32.gmra.mrb[0].mxu0 %v60
    %v144 = vpop.f32.mrb[0].mxu0
    %v145 = vadd.f32 0.0, %v144
    %v146 = vpop.f32.mrb[0].mxu0
    %147 = vmatprep.mubr.f32.mxu0 0.0
    %148 = vmatmul.mubr.f32.gmra.mrb[0].mxu0 %v61
    %v149 = vpop.f32.mrb[0].mxu0
    %v150 = vadd.f32 0.0, %v149
    %v151 = vpop.f32.mrb[0].mxu0
    %152 = vdwg.mxu0
    %v153 = vrsqrt.pop %v145
    %v154 = vrsqrt.pop %v150
    %v155 = vmul.f32 %v56, %v153
    %v156 = vmul.f32 %v57, %v154
    %v157 = vsub.f32 %v155, %v58
    %v158 = vsub.f32 %v156, %v59
    %v159 = vand.u32 2147483647, %v157
    %v160 = vand.u32 2147483647, %v158
    %v161 = vadd.f32 %v159, %v160
    %162 = vst [vmem:[#allocation8] sm:$0xff] %v161
    // Predicated region
    $region26: #{tpu_custom_call.1} parent=1 // pred_check
      _
    $region27: #{tpu_custom_call.1} parent=1 // pred_check_branch
      %164 = sbr.rel (0) target = $region29
    $region28: #{tpu_custom_call.1} parent=1 // pred_region
      %s166 = ssub.s32 128, 128
      %167 = vsyncadd [#allocation4], %s166
      %s169 = sshll.u32 [#allocation8], 4
      %s170 = int_to_ptr.vmem [resolvable:$true] %s169
      %172 = dma.vmem_to_hbm [thread:$0]  %s170, 128, %s3, [#allocation4]
    $region29: #{tpu_custom_call.1} parent=1 // pred_fallthru
      _
    // Predicated region
    $region30: #{tpu_custom_call.1} parent=1 // pred_check
      _
    $region31: #{tpu_custom_call.1} parent=1 // pred_check_branch
      %174 = sbr.rel (0) target = $region33
    $region32: #{tpu_custom_call.1} parent=1 // pred_region
      %175 = dma.done [#allocation4], 128
    $region33: #{tpu_custom_call.1} parent=1 // pred_fallthru
      _
    %176 = vsyncpa [#allocation3], 1
    %177 = vsyncpa [#allocation6], 1
    %178 = vsyncpa [#allocation4], 1

</llo_original>
